<compile_context>
chip_gen: v6e
topology: v6e:2x2x1
jax: 0.10.0
libtpu: 0.0.40
codegen_flags: <defaults>
</compile_context>

<pallas_src>
import jax
import jax.numpy as jnp
from jax.experimental import pallas as pl
from jax.experimental.pallas import tpu as pltpu

BN_EPS = 1e-3
MAX_TILE_N = 512
MAX_TILE_K = 512
LANE = 128


def _round_up(v, m):
    return ((v + m - 1) // m) * m


# ----------------------------------------------------------------------------
# Pallas kernels: K-tiled fused matmul + bias (+ residual) + ReLU
# ----------------------------------------------------------------------------
def _mm_bias_relu_kernel(x_ref, w_ref, b_ref, o_ref, acc_ref):
    k = pl.program_id(1)

    @pl.when(k == 0)
    def _():
        acc_ref[...] = jnp.zeros_like(acc_ref)

    acc_ref[...] += jnp.dot(x_ref[...], w_ref[...],
                            preferred_element_type=jnp.float32)

    @pl.when(k == pl.num_programs(1) - 1)
    def _():
        y = acc_ref[...] + b_ref[...]
        o_ref[...] = jnp.maximum(y, 0.0).astype(o_ref.dtype)


def _mm_bias_res_relu_kernel(x_ref, w_ref, b_ref, r_ref, o_ref, acc_ref):
    k = pl.program_id(1)

    @pl.when(k == 0)
    def _():
        acc_ref[...] = jnp.zeros_like(acc_ref)

    acc_ref[...] += jnp.dot(x_ref[...], w_ref[...],
                            preferred_element_type=jnp.float32)

    @pl.when(k == pl.num_programs(1) - 1)
    def _():
        y = acc_ref[...] + b_ref[...] + r_ref[...]
        o_ref[...] = jnp.maximum(y, 0.0).astype(o_ref.dtype)


def fused_linear(x, w, bias, residual=None):
    """relu(x @ w + bias (+ residual)).  x:(N,K) f32, w:(K,C) f32, bias:(C,)."""
    N, K = x.shape
    C = w.shape[1]

    # lane-dense padding; adaptive tiles (single big tile when the problem fits)
    Np0 = _round_up(N, LANE)
    tn = min(MAX_TILE_N, Np0)
    Np = _round_up(Np0, tn)
    Kp0 = _round_up(K, LANE)
    tk = min(MAX_TILE_K, Kp0)
    Kp = _round_up(Kp0, tk)
    Cp = _round_up(C, LANE)

    xp = jnp.pad(x.astype(jnp.bfloat16), ((0, Np - N), (0, Kp - K)))
    wp = jnp.pad(w.astype(jnp.bfloat16), ((0, Kp - K), (0, Cp - C)))
    bp = jnp.pad(bias, (0, Cp - C)).reshape(1, Cp)

    grid = (Np // tn, Kp // tk)
    in_specs = [
        pl.BlockSpec((tn, tk), lambda i, k: (i, k)),
        pl.BlockSpec((tk, Cp), lambda i, k: (k, 0)),
        pl.BlockSpec((1, Cp), lambda i, k: (0, 0)),
    ]
    args = [xp, wp, bp]
    kernel = _mm_bias_relu_kernel
    if residual is not None:
        rp = jnp.pad(residual.astype(jnp.float32), ((0, Np - N), (0, Cp - C)))
        in_specs.append(pl.BlockSpec((tn, Cp), lambda i, k: (i, 0)))
        args.append(rp)
        kernel = _mm_bias_res_relu_kernel

    out = pl.pallas_call(
        kernel,
        out_shape=jax.ShapeDtypeStruct((Np, Cp), jnp.float32),
        grid_spec=pltpu.PrefetchScalarGridSpec(
            num_scalar_prefetch=0,
            grid=grid,
            in_specs=in_specs,
            out_specs=pl.BlockSpec((tn, Cp), lambda i, k: (i, 0)),
            scratch_shapes=[pltpu.VMEM((tn, Cp), jnp.float32)],
        ),
        compiler_params=pltpu.CompilerParams(
            dimension_semantics=("parallel", "arbitrary"),
            vmem_limit_bytes=48 * 1024 * 1024,
        ),
    )(*args)
    return out[:N, :C]


# ----------------------------------------------------------------------------
# Sparse bookkeeping (compact active sets + neighbor index tables, plain JAX)
# ----------------------------------------------------------------------------
def build_rowid(coords, shape, batch_size):
    D, H, W = shape
    rowid = jnp.full((batch_size, D, H, W), -1, jnp.int32)
    return rowid.at[coords[:, 0], coords[:, 1], coords[:, 2], coords[:, 3]].set(
        jnp.arange(coords.shape[0], dtype=jnp.int32))


def _lookup(rowid, b, z, y, x, valid):
    _, D, H, W = rowid.shape
    zc = jnp.clip(z, 0, D - 1)
    yc = jnp.clip(y, 0, H - 1)
    xc = jnp.clip(x, 0, W - 1)
    nid = rowid[b, zc, yc, xc]
    return jnp.where(valid, nid, -1)


def neighbor_table_subm(coords, rowid):
    """(Na, 27) indices into the same level's active rows (-1 if missing)."""
    _, D, H, W = rowid.shape
    b, z, y, x = (coords[:, i] for i in range(4))
    cols = []
    for kd in range(3):
        for kh in range(3):
            for kw in range(3):
                zz, yy, xx = z + kd - 1, y + kh - 1, x + kw - 1
                valid = ((zz >= 0) & (zz < D) & (yy >= 0) & (yy < H)
                         & (xx >= 0) & (xx < W))
                cols.append(_lookup(rowid, b, zz, yy, xx, valid))
    return jnp.stack(cols, axis=1)


def neighbor_table_down(out_coords, rowid_in, stride, pad):
    """Strided SparseConv3d: output rows -> input-level active rows."""
    _, D, H, W = rowid_in.shape
    b, zo, yo, xo = (out_coords[:, i] for i in range(4))
    cols = []
    for kd in range(3):
        for kh in range(3):
            for kw in range(3):
                zz = zo * stride - pad[0] + kd
                yy = yo * stride - pad[1] + kh
                xx = xo * stride - pad[2] + kw
                valid = ((zz >= 0) & (zz < D) & (yy >= 0) & (yy < H)
                         & (xx >= 0) & (xx < W))
                cols.append(_lookup(rowid_in, b, zz, yy, xx, valid))
    return jnp.stack(cols, axis=1)


def neighbor_table_inverse(fine_coords, rowid_coarse, stride, pad):
    """SparseInverseConv3d: fine-level rows -> coarse-level active rows."""
    _, Dc, Hc, Wc = rowid_coarse.shape
    b, z, y, x = (fine_coords[:, i] for i in range(4))
    cols = []
    for kd in range(3):
        for kh in range(3):
            for kw in range(3):
                sz, sy, sx = z + pad[0] - kd, y + pad[1] - kh, x + pad[2] - kw
                valid = ((sz >= 0) & (sz % stride == 0) & (sz // stride < Dc)
                         & (sy >= 0) & (sy % stride == 0) & (sy // stride < Hc)
                         & (sx >= 0) & (sx % stride == 0) & (sx // stride < Wc))
                cols.append(_lookup(rowid_coarse, b, sz // stride,
                                    sy // stride, sx // stride, valid))
    return jnp.stack(cols, axis=1)


def down_occupancy(occ, stride, pad):
    """Output occupancy of a strided SparseConv3d ('any active in rec. field')."""
    B, D, H, W = occ.shape
    oshape = tuple((s + 2 * p - 3) // stride + 1
                   for s, p in zip((D, H, W), pad))
    Do, Ho, Wo = oshape
    op = jnp.pad(occ, ((0, 0), (pad[0],) * 2, (pad[1],) * 2, (pad[2],) * 2))
    acc = jnp.zeros((B, Do, Ho, Wo), jnp.bool_)
    for kd in range(3):
        for kh in range(3):
            for kw in range(3):
                acc = acc | op[:, kd:kd + (Do - 1) * stride + 1:stride,
                               kh:kh + (Ho - 1) * stride + 1:stride,
                               kw:kw + (Wo - 1) * stride + 1:stride]
    return acc, oshape


# ----------------------------------------------------------------------------
# Layer wrappers on compact features
# ----------------------------------------------------------------------------
def conv_apply(feats_in, nbr, p, residual=None):
    """Gather-GEMM sparse conv: feats_in (Nin,Cin), nbr (Nout,27) -> (Nout,Cout)."""
    Nin, Cin = feats_in.shape
    Nout = nbr.shape[0]
    feats_z = jnp.concatenate(
        [feats_in, jnp.zeros((1, Cin), feats_in.dtype)], axis=0)
    idx = jnp.where(nbr >= 0, nbr, Nin)              # -1 -> zero row
    g = feats_z[idx].reshape(Nout, 27 * Cin)         # tap-major, channel-minor
    return fused_linear(g, p['w'], p['bias'], residual)


def basic_block(feats, nbr, p1, p2):
    """SparseBasicBlock: conv-bn-relu, conv-bn, +identity, relu (fused)."""
    h = conv_apply(feats, nbr, p1)
    return conv_apply(h, nbr, p2, residual=feats)


def ur_block(x_lateral, x_bottom, nbr, pt1, pt2, pm, inv_fn):
    x_trans = basic_block(x_lateral, nbr, pt1, pt2)
    x_cat = jnp.concatenate([x_bottom, x_trans], axis=-1)
    x_m = conv_apply(x_cat, nbr, pm)
    cout = x_m.shape[-1]
    red = x_cat.reshape(x_cat.shape[0], cout, -1).sum(axis=-1)  # channel_reduction
    return inv_fn(x_m + red)


# ----------------------------------------------------------------------------
# Deterministic parameter construction (BN scale folded into the weights)
# ----------------------------------------------------------------------------
def make_conv_params(key, cin, cout, kvol=27):
    k1, k2, k3 = jax.random.split(key, 3)
    fan_in = kvol * cin
    w = jax.random.normal(k1, (fan_in, cout), jnp.float32) / jnp.sqrt(float(fan_in))
    gamma = 1.0 + 0.1 * jax.random.normal(k2, (cout,), jnp.float32)
    beta = 0.05 * jax.random.normal(k3, (cout,), jnp.float32)
    run_mean = jnp.zeros((cout,), jnp.float32)
    run_var = jnp.ones((cout,), jnp.float32)
    scale = gamma / jnp.sqrt(run_var + BN_EPS)       # eval-mode BN
    bias = beta - run_mean * scale
    return dict(w=w * scale[None, :], bias=bias)


def build_params(key, cin, d1):
    keys = iter(jax.random.split(key, 64))
    nk = lambda: next(keys)
    P = {}
    P['conv1'] = [make_conv_params(nk(), cin, d1),
                  make_conv_params(nk(), d1, d1),
                  make_conv_params(nk(), d1, d1)]
    P['conv2'] = [make_conv_params(nk(), d1, 2 * d1),
                  make_conv_params(nk(), 2 * d1, 2 * d1),
                  make_conv_params(nk(), 2 * d1, 2 * d1)]
    P['conv3'] = [make_conv_params(nk(), 2 * d1, 4 * d1),
                  make_conv_params(nk(), 4 * d1, 4 * d1),
                  make_conv_params(nk(), 4 * d1, 4 * d1)]
    P['conv4'] = [make_conv_params(nk(), 4 * d1, 8 * d1),
                  make_conv_params(nk(), 8 * d1, 8 * d1),
                  make_conv_params(nk(), 8 * d1, 8 * d1)]
    P['conv_up_t4'] = (make_conv_params(nk(), 8 * d1, 8 * d1),
                       make_conv_params(nk(), 8 * d1, 8 * d1))
    P['conv_up_m4'] = make_conv_params(nk(), 16 * d1, 8 * d1)
    P['inv_conv4'] = make_conv_params(nk(), 8 * d1, 4 * d1)
    P['conv_up_t3'] = (make_conv_params(nk(), 4 * d1, 4 * d1),
                       make_conv_params(nk(), 4 * d1, 4 * d1))
    P['conv_up_m3'] = make_conv_params(nk(), 8 * d1, 4 * d1)
    P['inv_conv3'] = make_conv_params(nk(), 4 * d1, 2 * d1)
    P['conv_up_t2'] = (make_conv_params(nk(), 2 * d1, 2 * d1),
                       make_conv_params(nk(), 2 * d1, 2 * d1))
    P['conv_up_m2'] = make_conv_params(nk(), 4 * d1, 2 * d1)
    P['inv_conv2'] = make_conv_params(nk(), 2 * d1, d1)
    P['conv_up_t1'] = (make_conv_params(nk(), d1, d1),
                       make_conv_params(nk(), d1, d1))
    P['conv_up_m1'] = make_conv_params(nk(), 2 * d1, d1)
    P['inv_conv1'] = make_conv_params(nk(), d1, d1)
    return P


# ----------------------------------------------------------------------------
# UNetV2 forward (conv5 / conv6 / global_conv disabled, as with default cfg)
# ----------------------------------------------------------------------------
def unet_forward(params, voxel_feat, voxel_coords_bzyx, batch_size,
                 sparse_shape, voxel_size, pc_range):
    B = batch_size
    shape1 = tuple(int(s) for s in sparse_shape)

    coords1 = voxel_coords_bzyx.astype(jnp.int32)
    rowid1 = build_rowid(coords1, shape1, B)
    occ1 = rowid1 >= 0
    nbr1 = neighbor_table_subm(coords1, rowid1)

    # ------------------------------ Encoder ---------------------------------
    x1 = voxel_feat.astype(jnp.float32)
    for p in params['conv1']:
        x1 = conv_apply(x1, nbr1, p)

    occ2, shape2 = down_occupancy(occ1, 2, (1, 1, 1))
    coords2 = jnp.argwhere(occ2).astype(jnp.int32)
    rowid2 = build_rowid(coords2, shape2, B)
    x2 = conv_apply(x1, neighbor_table_down(coords2, rowid1, 2, (1, 1, 1)),
                    params['conv2'][0])
    nbr2 = neighbor_table_subm(coords2, rowid2)
    for p in params['conv2'][1:]:
        x2 = conv_apply(x2, nbr2, p)

    occ3, shape3 = down_occupancy(occ2, 2, (1, 1, 1))
    coords3 = jnp.argwhere(occ3).astype(jnp.int32)
    rowid3 = build_rowid(coords3, shape3, B)
    x3 = conv_apply(x2, neighbor_table_down(coords3, rowid2, 2, (1, 1, 1)),
                    params['conv3'][0])
    nbr3 = neighbor_table_subm(coords3, rowid3)
    for p in params['conv3'][1:]:
        x3 = conv_apply(x3, nbr3, p)

    occ4, shape4 = down_occupancy(occ3, 2, (0, 1, 1))
    coords4 = jnp.argwhere(occ4).astype(jnp.int32)
    rowid4 = build_rowid(coords4, shape4, B)
    x4 = conv_apply(x3, neighbor_table_down(coords4, rowid3, 2, (0, 1, 1)),
                    params['conv4'][0])
    nbr4 = neighbor_table_subm(coords4, rowid4)
    for p in params['conv4'][1:]:
        x4 = conv_apply(x4, nbr4, p)

    x_up5 = x4  # conv5 is None

    # ---------------------- per-level skip outputs --------------------------
    batch_dict = {}
    vs = jnp.asarray(voxel_size, jnp.float32)
    pr = jnp.asarray(pc_range[:3], jnp.float32)
    perm_xyz = jnp.array([3, 2, 1])
    levels = [(coords1, x1, 1.0), (coords2, x2, 2.0),
              (coords3, x3, 4.0), (coords4, x4, 8.0)]
    for i, (cds, feats, ds) in enumerate(levels):
        corners = cds[:, perm_xyz].astype(jnp.float32) * (vs * ds) + pr
        corners = corners + vs * 0.5
        batch_dict[f'spconv_unet_bcenter{5 - i}'] = jnp.concatenate(
            [cds[:, :1].astype(jnp.float32), corners], axis=-1)
        batch_dict[f'spconv_unet_feat{5 - i}'] = feats

    # ------------------------------ Decoder ---------------------------------
    nbr_i4 = neighbor_table_inverse(coords3, rowid4, 2, (0, 1, 1))
    nbr_i3 = neighbor_table_inverse(coords2, rowid3, 2, (1, 1, 1))
    nbr_i2 = neighbor_table_inverse(coords1, rowid2, 2, (1, 1, 1))

    inv4 = lambda h: conv_apply(h, nbr_i4, params['inv_conv4'])
    x_up4 = ur_block(x4, x_up5, nbr4, *params['conv_up_t4'],
                     params['conv_up_m4'], inv4)
    inv3 = lambda h: conv_apply(h, nbr_i3, params['inv_conv3'])
    x_up3 = ur_block(x3, x_up4, nbr3, *params['conv_up_t3'],
                     params['conv_up_m3'], inv3)
    inv2 = lambda h: conv_apply(h, nbr_i2, params['inv_conv2'])
    x_up2 = ur_block(x2, x_up3, nbr2, *params['conv_up_t2'],
                     params['conv_up_m2'], inv2)
    inv1 = lambda h: conv_apply(h, nbr1, params['inv_conv1'])   # subm1
    x_up1 = ur_block(x1, x_up2, nbr1, *params['conv_up_t1'],
                     params['conv_up_m1'], inv1)

    batch_dict['unet_voxel_feat'] = x_up1
    centers = (coords1[:, perm_xyz].astype(jnp.float32) + 0.5) * vs + pr
    batch_dict['unet_voxel_bxyz'] = jnp.concatenate(
        [coords1[:, :1].astype(jnp.float32), centers], axis=1)
    return batch_dict


# ----------------------------------------------------------------------------
if __name__ == "__main__":
    key = jax.random.PRNGKey(0)
    kf, kc, kp = jax.random.split(key, 3)

    # runtime_cfg-equivalent small config
    grid_size = [16, 16, 8]                               # (x, y, z)
    sparse_shape = (grid_size[2] + 1, grid_size[1], grid_size[0])  # (z+1, y, x)
    voxel_size = [0.05, 0.05, 0.1]
    point_cloud_range = [0.0, -0.4, -0.8, 0.8, 0.4, 0.0]
    batch_size = 2
    input_channels = 4
    scale = 0.25
    d1 = int(32 * scale)                                  # 8

    # deterministic sparse voxel input: unique (b, z, y, x) coords + features
    n_vox = 256
    Dz, Dy, Dx = sparse_shape
    total = batch_size * Dz * Dy * Dx
    flat = jax.random.permutation(kc, total)[:n_vox]
    b = flat // (Dz * Dy * Dx)
    r = flat % (Dz * Dy * Dx)
    z = r // (Dy * Dx)
    r = r % (Dy * Dx)
    y = r // Dx
    x = r % Dx
    voxel_bcoords_bzyx = jnp.stack([b, z, y, x], axis=1).astype(jnp.int32)
    voxel_feat = jax.random.normal(kf, (n_vox, input_channels), jnp.float32)

    params = build_params(kp, input_channels, d1)

    out = unet_forward(params, voxel_feat, voxel_bcoords_bzyx, batch_size,
                       sparse_shape, voxel_size, point_cloud_range)
    jax.block_until_ready(out['unet_voxel_feat'])
    assert out['unet_voxel_feat'].shape == (n_vox, d1)
    assert out['unet_voxel_bxyz'].shape == (n_vox, 4)
    assert out['spconv_unet_feat5'].shape == (n_vox, d1)
    print("KERNEL_OK")
</pallas_src>

<mosaic_0001>
module attributes {stable_mosaic.version = 11 : i64} {
  func.func @_mm_bias_relu_kernel(%arg0: i32, %arg1: i32, %arg2: memref<256x128xbf16, #tpu.memory_space<vmem>>, %arg3: memref<128x128xbf16, #tpu.memory_space<vmem>>, %arg4: memref<1x128xf32, #tpu.memory_space<vmem>>, %arg5: memref<256x128xf32, #tpu.memory_space<vmem>>, %arg6: memref<256x128xf32, #tpu.memory_space<vmem>>) attributes {dimension_semantics = [#tpu.dimension_semantics<parallel>, #tpu.dimension_semantics<arbitrary>], iteration_bounds = array<i64: 1, 1>, scalar_prefetch = 0 : i64, scratch_operands = 1 : i64, tpu.core_type = #tpu.core_type<tc>, window_params = [{transform_indices = @transform_0, window_bounds = array<i64: 256, 128>}, {transform_indices = @transform_1, window_bounds = array<i64: 128, 128>}, {pipeline_mode = #tpu.pipeline_mode<synchronous>, transform_indices = @transform_2, window_bounds = array<i64: 1, 128>}, {transform_indices = @transform_3, window_bounds = array<i64: 256, 128>}]} {
    %c0_i32 = arith.constant 0 : i32
    %0 = arith.cmpi eq, %arg1, %c0_i32 : i32
    %1 = arith.extui %0 : i1 to i32
    %c0_i32_0 = arith.constant 0 : i32
    %2 = arith.cmpi ne, %1, %c0_i32_0 : i32
    scf.if %2 {
      %cst_10 = arith.constant 0.000000e+00 : f32
      %12 = vector.broadcast %cst_10 : f32 to vector<256x128xf32>
      %c0_11 = arith.constant 0 : index
      %c0_12 = arith.constant 0 : index
      %13 = vector.load %arg6[%c0_11, %c0_12] : memref<256x128xf32, #tpu.memory_space<vmem>>, vector<256x128xf32>
      tpu.vector_store %arg6[%c0_11, %c0_12], %12 {strides = array<i32>} : memref<256x128xf32, #tpu.memory_space<vmem>>, vector<256x128xf32>,
    } else {
    }
    %c0 = arith.constant 0 : index
    %c0_1 = arith.constant 0 : index
    %3 = vector.load %arg6[%c0, %c0_1] : memref<256x128xf32, #tpu.memory_space<vmem>>, vector<256x128xf32>
    %c0_2 = arith.constant 0 : index
    %c0_3 = arith.constant 0 : index
    %4 = vector.load %arg2[%c0_2, %c0_3] : memref<256x128xbf16, #tpu.memory_space<vmem>>, vector<256x128xbf16>
    %c0_4 = arith.constant 0 : index
    %c0_5 = arith.constant 0 : index
    %5 = vector.load %arg3[%c0_4, %c0_5] : memref<128x128xbf16, #tpu.memory_space<vmem>>, vector<128x128xbf16>
    %cst = arith.constant dense<0.000000e+00> : vector<256x128xf32>
    %6 = tpu.matmul %4, %5, %cst {dimension_numbers = #tpu.dot_dimension_numbers<[1], [0], [0], [1], [0, 0, 1, 1], [], []>} : vector<256x128xbf16>, vector<128x128xbf16>, vector<256x128xf32> -> vector<256x128xf32>
    %7 = arith.addf %3, %6 : vector<256x128xf32>
    %c0_6 = arith.constant 0 : index
    %c0_7 = arith.constant 0 : index
    %8 = vector.load %arg6[%c0_6, %c0_7] : memref<256x128xf32, #tpu.memory_space<vmem>>, vector<256x128xf32>
    tpu.vector_store %arg6[%c0_6, %c0_7], %7 {strides = array<i32>} : memref<256x128xf32, #tpu.memory_space<vmem>>, vector<256x128xf32>,
    %c0_i32_8 = arith.constant 0 : i32
    %9 = arith.cmpi eq, %arg1, %c0_i32_8 : i32
    %10 = arith.extui %9 : i1 to i32
    %c0_i32_9 = arith.constant 0 : i32
    %11 = arith.cmpi ne, %10, %c0_i32_9 : i32
    scf.if %11 {
      %c0_10 = arith.constant 0 : index
      %c0_11 = arith.constant 0 : index
      %12 = vector.load %arg6[%c0_10, %c0_11] : memref<256x128xf32, #tpu.memory_space<vmem>>, vector<256x128xf32>
      %c0_12 = arith.constant 0 : index
      %c0_13 = arith.constant 0 : index
      %13 = vector.load %arg4[%c0_12, %c0_13] : memref<1x128xf32, #tpu.memory_space<vmem>>, vector<1x128xf32>
      %14 = vector.broadcast %13 : vector<1x128xf32> to vector<256x128xf32>
      %15 = arith.addf %12, %14 : vector<256x128xf32>
      %cst_14 = arith.constant 0.000000e+00 : f32
      %16 = vector.broadcast %cst_14 : f32 to vector<256x128xf32>
      %17 = arith.maximumf %15, %16 : vector<256x128xf32>
      %c0_15 = arith.constant 0 : index
      %c0_16 = arith.constant 0 : index
      %18 = vector.load %arg5[%c0_15, %c0_16] : memref<256x128xf32, #tpu.memory_space<vmem>>, vector<256x128xf32>
      tpu.vector_store %arg5[%c0_15, %c0_16], %17 {strides = array<i32>} : memref<256x128xf32, #tpu.memory_space<vmem>>, vector<256x128xf32>,
    } else {
    }
    return
  }
  func.func @transform_0(%arg0: i32, %arg1: i32) -> (i32, i32) {
    %c0_i32 = arith.constant 0 : i32
    return %arg0, %arg1 : i32, i32
  }
  func.func @transform_1(%arg0: i32, %arg1: i32) -> (i32, i32) {
    %c0_i32 = arith.constant 0 : i32
    %c0_i32_0 = arith.constant 0 : i32
    return %arg1, %c0_i32 : i32, i32
  }
  func.func @transform_2(%arg0: i32, %arg1: i32) -> (i32, i32) {
    %c0_i32 = arith.constant 0 : i32
    %c0_i32_0 = arith.constant 0 : i32
    %c0_i32_1 = arith.constant 0 : i32
    return %c0_i32, %c0_i32_0 : i32, i32
  }
  func.func @transform_3(%arg0: i32, %arg1: i32) -> (i32, i32) {
    %c0_i32 = arith.constant 0 : i32
    %c0_i32_0 = arith.constant 0 : i32
    return %arg0, %c0_i32 : i32, i32
  }
}

</mosaic_0001>

<llo_original>
// kernel: tpu_custom_call.1
$region0: #{tpu_custom_call.1}
  #allocation0 [shape = 'u32[]', space=smem, size = 0x4, offset = 0x4, fixed_abs, tag = 'smem constant byte address 0x4 - core index']
  #allocation1 [shape = 'u32[144,128]{1,0:T(1,128)}', space=vmem, size = 0x12000, scoped, tag = 'internal scratch']
  #allocation2 [shape = 'f32[256,128]{1,0:T(8,128)}', space=vmem, size = 0x20000, scoped, tag = 'scratch operand']
  %s0 = inlined_call_operand.hbm [shape: bf16[256,128], index: 0, kind: input, shape index: {}]
  %s1 = inlined_call_operand.hbm [shape: bf16[128,128], index: 1, kind: input, shape index: {}]
  %s2 = inlined_call_operand.vmem [shape: f32[1,128], index: 2, kind: input, shape index: {}]
  %s3 = inlined_call_operand.hbm [shape: f32[256,128], index: 3, kind: output, shape index: {}]
  %s4 = sld [smem:[#allocation0]]
  $region38: #{tpu_custom_call.1} parent=0
    _
  %s6 = ssub.s32 1, %s4
  %s7 = scalar_select 0, %s6, %s4
  $region1: #{tpu_custom_call.1} parent=0
    #allocation3 [shape = 'u8[65536]{0}', space=vmem, size = 0x10000, scoped, tag = 'input window, operand 0, single buffered']
    #allocation4 [shape = 's32[1]{0}', space=sflag, size = 0x4, scoped, tag = 'scoped memory for tpu_custom_call.1']
    #allocation5 [shape = 's32[1]{0}', space=sflag, size = 0x4, scoped, tag = 'scoped memory for tpu_custom_call.1']
    #allocation6 [shape = 'u8[32768]{0}', space=vmem, size = 0x8000, scoped, tag = 'input window, operand 1, single buffered']
    #allocation7 [shape = 's32[1]{0}', space=sflag, size = 0x4, scoped, tag = 'scoped memory for tpu_custom_call.1']
    #allocation8 [shape = 'u8[131072]{0}', space=vmem, size = 0x20000, scoped, tag = 'output window, operand 0, single buffered']
    %8 = vsyncpa [#allocation4], 0
    %9 = vsyncpa [#allocation7], 0
    %10 = vsyncpa [#allocation5], 0
    // Predicated region
    $region2: #{tpu_custom_call.1} parent=1 // pred_check
      _
    $region3: #{tpu_custom_call.1} parent=1 // pred_check_branch
      %12 = sbr.rel (0) target = $region5
    $region4: #{tpu_custom_call.1} parent=1 // pred_region
      %s14 = ssub.s32 2048, 2048
      %15 = vsyncadd [#allocation4], %s14
      %s16 = sshll.u32 [#allocation3], 4
      %s17 = int_to_ptr.vmem [resolvable:$true] %s16
      %22 = dma.hbm_to_vmem [thread:$0]  %s0, 2048, %s17, [#allocation4], 64, 64, 4
    $region5: #{tpu_custom_call.1} parent=1 // pred_fallthru
      _
    // Predicated region
    $region6: #{tpu_custom_call.1} parent=1 // pred_check
      _
    $region7: #{tpu_custom_call.1} parent=1 // pred_check_branch
      %24 = sbr.rel (0) target = $region9
    $region8: #{tpu_custom_call.1} parent=1 // pred_region
      %s26 = ssub.s32 1024, 1024
      %27 = vsyncadd [#allocation7], %s26
      %s28 = sshll.u32 [#allocation6], 4
      %s29 = int_to_ptr.vmem [resolvable:$true] %s28
      %34 = dma.hbm_to_vmem [thread:$0]  %s1, 1024, %s29, [#allocation7], 64, 64, 4
    $region9: #{tpu_custom_call.1} parent=1 // pred_fallthru
      _
    // Predicated region
    $region10: #{tpu_custom_call.1} parent=1 // pred_check
      _
    $region11: #{tpu_custom_call.1} parent=1 // pred_check_branch
      %36 = sbr.rel (0) target = $region13
    $region12: #{tpu_custom_call.1} parent=1 // pred_region
      _
    $region13: #{tpu_custom_call.1} parent=1 // pred_fallthru
      _
    // Predicated region
    $region14: #{tpu_custom_call.1} parent=1 // pred_check
      _
    $region15: #{tpu_custom_call.1} parent=1 // pred_check_branch
      %38 = sbr.rel (0) target = $region17
    $region16: #{tpu_custom_call.1} parent=1 // pred_region
      %39 = dma.done [#allocation4], 2048
    $region17: #{tpu_custom_call.1} parent=1 // pred_fallthru
      _
    // Predicated region
    $region18: #{tpu_custom_call.1} parent=1 // pred_check
      _
    $region19: #{tpu_custom_call.1} parent=1 // pred_check_branch
      %41 = sbr.rel (0) target = $region21
    $region20: #{tpu_custom_call.1} parent=1 // pred_region
      %42 = dma.done [#allocation7], 1024
    $region21: #{tpu_custom_call.1} parent=1 // pred_fallthru
      _
    %p44 = scmp.eq.s32.totalorder 0, 0
    // Predicated region
    $region22: #{tpu_custom_call.1} parent=1 // pred_check
      %p45 = pneg %p44
    $region23: #{tpu_custom_call.1} parent=1 // pred_check_branch
      %47 = sbr.rel (%p45) target = $region25
    $region24: #{tpu_custom_call.1} parent=1 // pred_region
      %48 = vst [vmem:[#allocation2] sm:$0xff] 0.0
      %49 = vst [vmem:[#allocation2 + $0x8] sm:$0xff] 0.0
      %50 = vst [vmem:[#allocation2 + $0x10] sm:$0xff] 0.0
      %51 = vst [vmem:[#allocation2 + $0x18] sm:$0xff] 0.0
      %52 = vst [vmem:[#allocation2 + $0x20] sm:$0xff] 0.0
      %53 = vst [vmem:[#allocation2 + $0x28] sm:$0xff] 0.0
      %54 = vst [vmem:[#allocation2 + $0x30] sm:$0xff] 0.0
      %55 = vst [vmem:[#allocation2 + $0x38] sm:$0xff] 0.0
      %56 = vst [vmem:[#allocation2 + $0x40] sm:$0xff] 0.0
      %57 = vst [vmem:[#allocation2 + $0x48] sm:$0xff] 0.0
      %58 = vst [vmem:[#allocation2 + $0x50] sm:$0xff] 0.0
      %59 = vst [vmem:[#allocation2 + $0x58] sm:$0xff] 0.0
      %60 = vst [vmem:[#allocation2 + $0x60] sm:$0xff] 0.0
      %61 = vst [vmem:[#allocation2 + $0x68] sm:$0xff] 0.0
      %62 = vst [vmem:[#allocation2 + $0x70] sm:$0xff] 0.0
      %63 = vst [vmem:[#allocation2 + $0x78] sm:$0xff] 0.0
      %64 = vst [vmem:[#allocation2 + $0x80] sm:$0xff] 0.0
      %65 = vst [vmem:[#allocation2 + $0x88] sm:$0xff] 0.0
      %66 = vst [vmem:[#allocation2 + $0x90] sm:$0xff] 0.0
      %67 = vst [vmem:[#allocation2 + $0x98] sm:$0xff] 0.0
      %68 = vst [vmem:[#allocation2 + $0xa0] sm:$0xff] 0.0
      %69 = vst [vmem:[#allocation2 + $0xa8] sm:$0xff] 0.0
      %70 = vst [vmem:[#allocation2 + $0xb0] sm:$0xff] 0.0
      %71 = vst [vmem:[#allocation2 + $0xb8] sm:$0xff] 0.0
      %72 = vst [vmem:[#allocation2 + $0xc0] sm:$0xff] 0.0
      %73 = vst [vmem:[#allocation2 + $0xc8] sm:$0xff] 0.0
      %74 = vst [vmem:[#allocation2 + $0xd0] sm:$0xff] 0.0
      %75 = vst [vmem:[#allocation2 + $0xd8] sm:$0xff] 0.0
      %76 = vst [vmem:[#allocation2 + $0xe0] sm:$0xff] 0.0
      %77 = vst [vmem:[#allocation2 + $0xe8] sm:$0xff] 0.0
      %78 = vst [vmem:[#allocation2 + $0xf0] sm:$0xff] 0.0
      %79 = vst [vmem:[#allocation2 + $0xf8] sm:$0xff] 0.0
    $region25: #{tpu_custom_call.1} parent=1 // pred_fallthru
      _
    %v80 = vld [vmem:[#allocation2] sm:$0xff]
    %v81 = vld [vmem:[#allocation2 + $0x8] sm:$0xff]
    %v82 = vld [vmem:[#allocation2 + $0x10] sm:$0xff]
    %v83 = vld [vmem:[#allocation2 + $0x18] sm:$0xff]
    %v84 = vld [vmem:[#allocation2 + $0x20] sm:$0xff]
    %v85 = vld [vmem:[#allocation2 + $0x28] sm:$0xff]
    %v86 = vld [vmem:[#allocation2 + $0x30] sm:$0xff]
    %v87 = vld [vmem:[#allocation2 + $0x38] sm:$0xff]
    %v88 = vld [vmem:[#allocation2 + $0x40] sm:$0xff]
    %v89 = vld [vmem:[#allocation2 + $0x48] sm:$0xff]
    %v90 = vld [vmem:[#allocation2 + $0x50] sm:$0xff]
    %v91 = vld [vmem:[#allocation2 + $0x58] sm:$0xff]
    %v92 = vld [vmem:[#allocation2 + $0x60] sm:$0xff]
    %v93 = vld [vmem:[#allocation2 + $0x68] sm:$0xff]
    %v94 = vld [vmem:[#allocation2 + $0x70] sm:$0xff]
    %v95 = vld [vmem:[#allocation2 + $0x78] sm:$0xff]
    %v96 = vld [vmem:[#allocation2 + $0x80] sm:$0xff]
    %v97 = vld [vmem:[#allocation2 + $0x88] sm:$0xff]
    %v98 = vld [vmem:[#allocation2 + $0x90] sm:$0xff]
    %v99 = vld [vmem:[#allocation2 + $0x98] sm:$0xff]
    %v100 = vld [vmem:[#allocation2 + $0xa0] sm:$0xff]
    %v101 = vld [vmem:[#allocation2 + $0xa8] sm:$0xff]
    %v102 = vld [vmem:[#allocation2 + $0xb0] sm:$0xff]
    %v103 = vld [vmem:[#allocation2 + $0xb8] sm:$0xff]
    %v104 = vld [vmem:[#allocation2 + $0xc0] sm:$0xff]
    %v105 = vld [vmem:[#allocation2 + $0xc8] sm:$0xff]
    %v106 = vld [vmem:[#allocation2 + $0xd0] sm:$0xff]
    %v107 = vld [vmem:[#allocation2 + $0xd8] sm:$0xff]
    %v108 = vld [vmem:[#allocation2 + $0xe0] sm:$0xff]
    %v109 = vld [vmem:[#allocation2 + $0xe8] sm:$0xff]
    %v110 = vld [vmem:[#allocation2 + $0xf0] sm:$0xff]
    %v111 = vld [vmem:[#allocation2 + $0xf8] sm:$0xff]
    %v112 = vld [vmem:[#allocation3] sm:$0xf]
    %v113 = vld [vmem:[#allocation3 + $0x4] sm:$0xf]
    %v114 = vld [vmem:[#allocation3 + $0x8] sm:$0xf]
    %v115 = vld [vmem:[#allocation3 + $0xc] sm:$0xf]
    %v116 = vld [vmem:[#allocation3 + $0x10] sm:$0xf]
    %v117 = vld [vmem:[#allocation3 + $0x14] sm:$0xf]
    %v118 = vld [vmem:[#allocation3 + $0x18] sm:$0xf]
    %v119 = vld [vmem:[#allocation3 + $0x1c] sm:$0xf]
    %v120 = vld [vmem:[#allocation3 + $0x20] sm:$0xf]
    %v121 = vld [vmem:[#allocation3 + $0x24] sm:$0xf]
    %v122 = vld [vmem:[#allocation3 + $0x28] sm:$0xf]
    %v123 = vld [vmem:[#allocation3 + $0x2c] sm:$0xf]
    %v124 = vld [vmem:[#allocation3 + $0x30] sm:$0xf]
    %v125 = vld [vmem:[#allocation3 + $0x34] sm:$0xf]
    %v126 = vld [vmem:[#allocation3 + $0x38] sm:$0xf]
    %v127 = vld [vmem:[#allocation3 + $0x3c] sm:$0xf]
    %v128 = vld [vmem:[#allocation3 + $0x40] sm:$0xf]
    %v129 = vld [vmem:[#allocation3 + $0x44] sm:$0xf]
    %v130 = vld [vmem:[#allocation3 + $0x48] sm:$0xf]
    %v131 = vld [vmem:[#allocation3 + $0x4c] sm:$0xf]
    %v132 = vld [vmem:[#allocation3 + $0x50] sm:$0xf]
    %v133 = vld [vmem:[#allocation3 + $0x54] sm:$0xf]
    %v134 = vld [vmem:[#allocation3 + $0x58] sm:$0xf]
    %v135 = vld [vmem:[#allocation3 + $0x5c] sm:$0xf]
    %v136 = vld [vmem:[#allocation3 + $0x60] sm:$0xf]
    %v137 = vld [vmem:[#allocation3 + $0x64] sm:$0xf]
    %v138 = vld [vmem:[#allocation3 + $0x68] sm:$0xf]
    %v139 = vld [vmem:[#allocation3 + $0x6c] sm:$0xf]
    %v140 = vld [vmem:[#allocation3 + $0x70] sm:$0xf]
    %v141 = vld [vmem:[#allocation3 + $0x74] sm:$0xf]
    %v142 = vld [vmem:[#allocation3 + $0x78] sm:$0xf]
    %v143 = vld [vmem:[#allocation3 + $0x7c] sm:$0xf]
    %v144 = vld [vmem:[#allocation6] sm:$0xf]
    %v145 = vld [vmem:[#allocation6 + $0x4] sm:$0xf]
    %v146 = vld [vmem:[#allocation6 + $0x8] sm:$0xf]
    %v147 = vld [vmem:[#allocation6 + $0xc] sm:$0xf]
    %v148 = vld [vmem:[#allocation6 + $0x10] sm:$0xf]
    %v149 = vld [vmem:[#allocation6 + $0x14] sm:$0xf]
    %v150 = vld [vmem:[#allocation6 + $0x18] sm:$0xf]
    %v151 = vld [vmem:[#allocation6 + $0x1c] sm:$0xf]
    %v152 = vld [vmem:[#allocation6 + $0x20] sm:$0xf]
    %v153 = vld [vmem:[#allocation6 + $0x24] sm:$0xf]
    %v154 = vld [vmem:[#allocation6 + $0x28] sm:$0xf]
    %v155 = vld [vmem:[#allocation6 + $0x2c] sm:$0xf]
    %v156 = vld [vmem:[#allocation6 + $0x30] sm:$0xf]
    %v157 = vld [vmem:[#allocation6 + $0x34] sm:$0xf]
    %v158 = vld [vmem:[#allocation6 + $0x38] sm:$0xf]
    %v159 = vld [vmem:[#allocation6 + $0x3c] sm:$0xf]
    %v192 = vunpack.c.l.b16 %v112
    %v193 = vunpack.c.l.b16 %v113
    %v194 = vunpack.c.l.b16 %v114
    %v195 = vunpack.c.l.b16 %v115
    %v196 = vunpack.c.l.b16 %v116
    %v197 = vunpack.c.l.b16 %v117
    %v198 = vunpack.c.l.b16 %v118
    %v199 = vunpack.c.l.b16 %v119
    %v200 = vunpack.c.l.b16 %v120
    %v201 = vunpack.c.l.b16 %v121
    %v202 = vunpack.c.l.b16 %v122
    %v203 = vunpack.c.l.b16 %v123
    %v204 = vunpack.c.l.b16 %v124
    %v205 = vunpack.c.l.b16 %v125
    %v206 = vunpack.c.l.b16 %v126
    %v207 = vunpack.c.l.b16 %v127
    %v208 = vunpack.c.l.b16 %v128
    %v209 = vunpack.c.l.b16 %v129
    %v210 = vunpack.c.l.b16 %v130
    %v211 = vunpack.c.l.b16 %v131
    %v212 = vunpack.c.l.b16 %v132
    %v213 = vunpack.c.l.b16 %v133
    %v214 = vunpack.c.l.b16 %v134
    %v215 = vunpack.c.l.b16 %v135
    %v216 = vunpack.c.l.b16 %v136
    %v217 = vunpack.c.l.b16 %v137
    %v218 = vunpack.c.l.b16 %v138
    %v219 = vunpack.c.l.b16 %v139
    %v220 = vunpack.c.l.b16 %v140
    %v221 = vunpack.c.l.b16 %v141
    %v222 = vunpack.c.l.b16 %v142
    %v223 = vunpack.c.l.b16 %v143
    %v224 = vpack.c.b16 %v193, %v192
    %v225 = vpack.c.b16 %v195, %v194
    %v226 = vpack.c.b16 %v197, %v196
    %v227 = vpack.c.b16 %v199, %v198
    %v228 = vpack.c.b16 %v201, %v200
    %v229 = vpack.c.b16 %v203, %v202
    %v230 = vpack.c.b16 %v205, %v204
    %v231 = vpack.c.b16 %v207, %v206
    %v232 = vpack.c.b16 %v209, %v208
    %v233 = vpack.c.b16 %v211, %v210
    %v234 = vpack.c.b16 %v213, %v212
    %v235 = vpack.c.b16 %v215, %v214
    %v236 = vpack.c.b16 %v217, %v216
    %v237 = vpack.c.b16 %v219, %v218
    %v238 = vpack.c.b16 %v221, %v220
    %v239 = vpack.c.b16 %v223, %v222
    %v272 = vunpack.c.l.b16 %v144
    %v273 = vunpack.c.l.b16 %v145
    %v274 = vunpack.c.l.b16 %v146
    %v275 = vunpack.c.l.b16 %v147
    %v276 = vunpack.c.l.b16 %v148
    %v277 = vunpack.c.l.b16 %v149
    %v278 = vunpack.c.l.b16 %v150
    %v279 = vunpack.c.l.b16 %v151
    %v280 = vunpack.c.l.b16 %v152
    %v281 = vunpack.c.l.b16 %v153
    %v282 = vunpack.c.l.b16 %v154
    %v283 = vunpack.c.l.b16 %v155
    %v284 = vunpack.c.l.b16 %v156
    %v285 = vunpack.c.l.b16 %v157
    %v286 = vunpack.c.l.b16 %v158
    %v287 = vunpack.c.l.b16 %v159
    %v288 = vpack.c.b16 %v273, %v272
    %v289 = vpack.c.b16 %v275, %v274
    %v290 = vpack.c.b16 %v277, %v276
    %v291 = vpack.c.b16 %v279, %v278
    %v292 = vpack.c.b16 %v281, %v280
    %v293 = vpack.c.b16 %v283, %v282
    %v294 = vpack.c.b16 %v285, %v284
    %v295 = vpack.c.b16 %v287, %v286
    %304 = vmatprep.subr.bf16.mxu0 0
    %305 = vmatpush1.bf16.msra.mxu0 %v295
    %306 = vmatprep.subr.bf16.mxu0 0
    %307 = vmatpush1.bf16.msra.mxu0 %v294
    %308 = vmatprep.subr.bf16.mxu0 0
    %309 = vmatpush1.bf16.msra.mxu0 %v293
    %310 = vmatprep.subr.bf16.mxu0 0
    %311 = vmatpush1.bf16.msra.mxu0 %v292
    %312 = vmatprep.subr.bf16.mxu0 0
    %313 = vmatpush1.bf16.msra.mxu0 %v291
    %314 = vmatprep.subr.bf16.mxu0 0
    %315 = vmatpush1.bf16.msra.mxu0 %v290
    %316 = vmatprep.subr.bf16.mxu0 0
    %317 = vmatpush1.bf16.msra.mxu0 %v289
    %318 = vmatprep.subr.bf16.mxu0 0
    %319 = vmatpush1.bf16.msra.mxu0 %v288
    %320 = vmatprep.subr.bf16.mxu0 0
    %321 = vmatpush2.bf16.msra.mxu0 0
    %322 = vmatprep.subr.bf16.mxu0 0
    %323 = vmatpush2.bf16.msra.mxu0 0
    %324 = vmatprep.subr.bf16.mxu0 0
    %325 = vmatpush2.bf16.msra.mxu0 0
    %326 = vmatprep.subr.bf16.mxu0 0
    %327 = vmatpush2.bf16.msra.mxu0 0
    %328 = vmatprep.subr.bf16.mxu0 0
    %329 = vmatpush2.bf16.msra.mxu0 0
    %330 = vmatprep.subr.bf16.mxu0 0
    %331 = vmatpush2.bf16.msra.mxu0 0
    %332 = vmatprep.subr.bf16.mxu0 0
    %333 = vmatpush2.bf16.msra.mxu0 0
    %334 = vmatprep.subr.bf16.mxu0 0
    %335 = vmatpush2.bf16.msra.mxu0 0
    %336 = vmatprep.mubr.bf16.mxu0 0
    %337 = vmatmul.mubr.bf16.gmra.mxu0 %v224
    %v338 = vpop.f32.mrf.mxu0
    %v339 = vadd.f32 0.0, %v338
    %v340 = vpop.f32.mrf.mxu0
    %v341 = vpop.f32.mrf.mxu0
    %v342 = vadd.f32 0.0, %v341
    %v343 = vpop.f32.mrf.mxu0
    %344 = vmatprep.mubr.bf16.mxu0 0
    %345 = vmatmul.mubr.bf16.gmra.mxu0 %v225
    %v346 = vpop.f32.mrf.mxu0
    %v347 = vadd.f32 0.0, %v346
    %v348 = vpop.f32.mrf.mxu0
    %v349 = vpop.f32.mrf.mxu0
    %v350 = vadd.f32 0.0, %v349
    %v351 = vpop.f32.mrf.mxu0
    %352 = vmatprep.mubr.bf16.mxu0 0
    %353 = vmatmul.mubr.bf16.gmra.mxu0 %v226
    %v354 = vpop.f32.mrf.mxu0
    %v355 = vadd.f32 0.0, %v354
    %v356 = vpop.f32.mrf.mxu0
    %v357 = vpop.f32.mrf.mxu0
    %v358 = vadd.f32 0.0, %v357
    %v359 = vpop.f32.mrf.mxu0
    %360 = vmatprep.mubr.bf16.mxu0 0
    %361 = vmatmul.mubr.bf16.gmra.mxu0 %v227
    %v362 = vpop.f32.mrf.mxu0
    %v363 = vadd.f32 0.0, %v362
    %v364 = vpop.f32.mrf.mxu0
    %v365 = vpop.f32.mrf.mxu0
    %v366 = vadd.f32 0.0, %v365
    %v367 = vpop.f32.mrf.mxu0
    %368 = vmatprep.mubr.bf16.mxu0 0
    %369 = vmatmul.mubr.bf16.gmra.mxu0 %v228
    %v370 = vpop.f32.mrf.mxu0
    %v371 = vadd.f32 0.0, %v370
    %v372 = vpop.f32.mrf.mxu0
    %v373 = vpop.f32.mrf.mxu0
    %v374 = vadd.f32 0.0, %v373
    %v375 = vpop.f32.mrf.mxu0
    %376 = vmatprep.mubr.bf16.mxu0 0
    %377 = vmatmul.mubr.bf16.gmra.mxu0 %v229
    %v378 = vpop.f32.mrf.mxu0
    %v379 = vadd.f32 0.0, %v378
    %v380 = vpop.f32.mrf.mxu0
    %v381 = vpop.f32.mrf.mxu0
    %v382 = vadd.f32 0.0, %v381
    %v383 = vpop.f32.mrf.mxu0
    %384 = vmatprep.mubr.bf16.mxu0 0
    %385 = vmatmul.mubr.bf16.gmra.mxu0 %v230
    %v386 = vpop.f32.mrf.mxu0
    %v387 = vadd.f32 0.0, %v386
    %v388 = vpop.f32.mrf.mxu0
    %v389 = vpop.f32.mrf.mxu0
    %v390 = vadd.f32 0.0, %v389
    %v391 = vpop.f32.mrf.mxu0
    %392 = vmatprep.mubr.bf16.mxu0 0
    %393 = vmatmul.mubr.bf16.gmra.mxu0 %v231
    %v394 = vpop.f32.mrf.mxu0
    %v395 = vadd.f32 0.0, %v394
    %v396 = vpop.f32.mrf.mxu0
    %v397 = vpop.f32.mrf.mxu0
    %v398 = vadd.f32 0.0, %v397
    %v399 = vpop.f32.mrf.mxu0
    %400 = vmatprep.mubr.bf16.mxu0 0
    %401 = vmatmul.mubr.bf16.gmra.mxu0 %v232
    %v402 = vpop.f32.mrf.mxu0
    %v403 = vadd.f32 0.0, %v402
    %v404 = vpop.f32.mrf.mxu0
    %v405 = vpop.f32.mrf.mxu0
    %v406 = vadd.f32 0.0, %v405
    %v407 = vpop.f32.mrf.mxu0
    %408 = vmatprep.mubr.bf16.mxu0 0
    %409 = vmatmul.mubr.bf16.gmra.mxu0 %v233
    %v410 = vpop.f32.mrf.mxu0
    %v411 = vadd.f32 0.0, %v410
    %v412 = vpop.f32.mrf.mxu0
    %v413 = vpop.f32.mrf.mxu0
    %v414 = vadd.f32 0.0, %v413
    %v415 = vpop.f32.mrf.mxu0
    %416 = vmatprep.mubr.bf16.mxu0 0
    %417 = vmatmul.mubr.bf16.gmra.mxu0 %v234
    %v418 = vpop.f32.mrf.mxu0
    %v419 = vadd.f32 0.0, %v418
    %v420 = vpop.f32.mrf.mxu0
    %v421 = vpop.f32.mrf.mxu0
    %v422 = vadd.f32 0.0, %v421
    %v423 = vpop.f32.mrf.mxu0
    %424 = vmatprep.mubr.bf16.mxu0 0
    %425 = vmatmul.mubr.bf16.gmra.mxu0 %v235
    %v426 = vpop.f32.mrf.mxu0
    %v427 = vadd.f32 0.0, %v426
    %v428 = vpop.f32.mrf.mxu0
    %v429 = vpop.f32.mrf.mxu0
    %v430 = vadd.f32 0.0, %v429
    %v431 = vpop.f32.mrf.mxu0
    %432 = vmatprep.mubr.bf16.mxu0 0
    %433 = vmatmul.mubr.bf16.gmra.mxu0 %v236
    %v434 = vpop.f32.mrf.mxu0
    %v435 = vadd.f32 0.0, %v434
    %v436 = vpop.f32.mrf.mxu0
    %v437 = vpop.f32.mrf.mxu0
    %v438 = vadd.f32 0.0, %v437
    %v439 = vpop.f32.mrf.mxu0
    %440 = vmatprep.mubr.bf16.mxu0 0
    %441 = vmatmul.mubr.bf16.gmra.mxu0 %v237
    %v442 = vpop.f32.mrf.mxu0
    %v443 = vadd.f32 0.0, %v442
    %v444 = vpop.f32.mrf.mxu0
    %v445 = vpop.f32.mrf.mxu0
    %v446 = vadd.f32 0.0, %v445
    %v447 = vpop.f32.mrf.mxu0
    %448 = vmatprep.mubr.bf16.mxu0 0
    %449 = vmatmul.mubr.bf16.gmra.mxu0 %v238
    %v450 = vpop.f32.mrf.mxu0
    %v451 = vadd.f32 0.0, %v450
    %v452 = vpop.f32.mrf.mxu0
    %v453 = vpop.f32.mrf.mxu0
    %v454 = vadd.f32 0.0, %v453
    %v455 = vpop.f32.mrf.mxu0
    %456 = vmatprep.mubr.bf16.mxu0 0
    %457 = vmatmul.mubr.bf16.gmra.mxu0 %v239
    %v458 = vpop.f32.mrf.mxu0
    %v459 = vadd.f32 0.0, %v458
    %v460 = vpop.f32.mrf.mxu0
    %v461 = vpop.f32.mrf.mxu0
    %v462 = vadd.f32 0.0, %v461
    %v463 = vpop.f32.mrf.mxu0
    %464 = vdwg.mxu0
    %v465 = vadd.f32 %v80, %v339
    %v466 = vadd.f32 %v81, %v342
    %v467 = vadd.f32 %v82, %v347
    %v468 = vadd.f32 %v83, %v350
    %v469 = vadd.f32 %v84, %v355
    %v470 = vadd.f32 %v85, %v358
    %v471 = vadd.f32 %v86, %v363
    %v472 = vadd.f32 %v87, %v366
    %v473 = vadd.f32 %v88, %v371
    %v474 = vadd.f32 %v89, %v374
    %v475 = vadd.f32 %v90, %v379
    %v476 = vadd.f32 %v91, %v382
    %v477 = vadd.f32 %v92, %v387
    %v478 = vadd.f32 %v93, %v390
    %v479 = vadd.f32 %v94, %v395
    %v480 = vadd.f32 %v95, %v398
    %v481 = vadd.f32 %v96, %v403
    %v482 = vadd.f32 %v97, %v406
    %v483 = vadd.f32 %v98, %v411
    %v484 = vadd.f32 %v99, %v414
    %v485 = vadd.f32 %v100, %v419
    %v486 = vadd.f32 %v101, %v422
    %v487 = vadd.f32 %v102, %v427
    %v488 = vadd.f32 %v103, %v430
    %v489 = vadd.f32 %v104, %v435
    %v490 = vadd.f32 %v105, %v438
    %v491 = vadd.f32 %v106, %v443
    %v492 = vadd.f32 %v107, %v446
    %v493 = vadd.f32 %v108, %v451
    %v494 = vadd.f32 %v109, %v454
    %v495 = vadd.f32 %v110, %v459
    %v496 = vadd.f32 %v111, %v462
    %497 = vst [vmem:[#allocation2] sm:$0xff] %v465
    %498 = vst [vmem:[#allocation2 + $0x8] sm:$0xff] %v466
    %499 = vst [vmem:[#allocation2 + $0x10] sm:$0xff] %v467
    %500 = vst [vmem:[#allocation2 + $0x18] sm:$0xff] %v468
    %501 = vst [vmem:[#allocation2 + $0x20] sm:$0xff] %v469
    %502 = vst [vmem:[#allocation2 + $0x28] sm:$0xff] %v470
    %503 = vst [vmem:[#allocation2 + $0x30] sm:$0xff] %v471
    %504 = vst [vmem:[#allocation2 + $0x38] sm:$0xff] %v472
    %505 = vst [vmem:[#allocation2 + $0x40] sm:$0xff] %v473
    %506 = vst [vmem:[#allocation2 + $0x48] sm:$0xff] %v474
    %507 = vst [vmem:[#allocation2 + $0x50] sm:$0xff] %v475
    %508 = vst [vmem:[#allocation2 + $0x58] sm:$0xff] %v476
    %509 = vst [vmem:[#allocation2 + $0x60] sm:$0xff] %v477
    %510 = vst [vmem:[#allocation2 + $0x68] sm:$0xff] %v478
    %511 = vst [vmem:[#allocation2 + $0x70] sm:$0xff] %v479
    %512 = vst [vmem:[#allocation2 + $0x78] sm:$0xff] %v480
    %513 = vst [vmem:[#allocation2 + $0x80] sm:$0xff] %v481
    %514 = vst [vmem:[#allocation2 + $0x88] sm:$0xff] %v482
    %515 = vst [vmem:[#allocation2 + $0x90] sm:$0xff] %v483
    %516 = vst [vmem:[#allocation2 + $0x98] sm:$0xff] %v484
    %517 = vst [vmem:[#allocation2 + $0xa0] sm:$0xff] %v485
    %518 = vst [vmem:[#allocation2 + $0xa8] sm:$0xff] %v486
    %519 = vst [vmem:[#allocation2 + $0xb0] sm:$0xff] %v487
    %520 = vst [vmem:[#allocation2 + $0xb8] sm:$0xff] %v488
    %521 = vst [vmem:[#allocation2 + $0xc0] sm:$0xff] %v489
    %522 = vst [vmem:[#allocation2 + $0xc8] sm:$0xff] %v490
    %523 = vst [vmem:[#allocation2 + $0xd0] sm:$0xff] %v491
    %524 = vst [vmem:[#allocation2 + $0xd8] sm:$0xff] %v492
    %525 = vst [vmem:[#allocation2 + $0xe0] sm:$0xff] %v493
    %526 = vst [vmem:[#allocation2 + $0xe8] sm:$0xff] %v494
    %527 = vst [vmem:[#allocation2 + $0xf0] sm:$0xff] %v495
    %528 = vst [vmem:[#allocation2 + $0xf8] sm:$0xff] %v496
    // Predicated region
    $region26: #{tpu_custom_call.1} parent=1 // pred_check
      %p529 = pneg %p44
    $region27: #{tpu_custom_call.1} parent=1 // pred_check_branch
      %531 = sbr.rel (%p529) target = $region29
    $region28: #{tpu_custom_call.1} parent=1 // pred_region
      %v532 = vld [vmem:[#allocation2] sm:$0xff]
      %v533 = vld [vmem:[#allocation2 + $0x8] sm:$0xff]
      %v534 = vld [vmem:[#allocation2 + $0x10] sm:$0xff]
      %v535 = vld [vmem:[#allocation2 + $0x18] sm:$0xff]
      %v536 = vld [vmem:[#allocation2 + $0x20] sm:$0xff]
      %v537 = vld [vmem:[#allocation2 + $0x28] sm:$0xff]
      %v538 = vld [vmem:[#allocation2 + $0x30] sm:$0xff]
      %v539 = vld [vmem:[#allocation2 + $0x38] sm:$0xff]
      %v540 = vld [vmem:[#allocation2 + $0x40] sm:$0xff]
      %v541 = vld [vmem:[#allocation2 + $0x48] sm:$0xff]
      %v542 = vld [vmem:[#allocation2 + $0x50] sm:$0xff]
      %v543 = vld [vmem:[#allocation2 + $0x58] sm:$0xff]
      %v544 = vld [vmem:[#allocation2 + $0x60] sm:$0xff]
      %v545 = vld [vmem:[#allocation2 + $0x68] sm:$0xff]
      %v546 = vld [vmem:[#allocation2 + $0x70] sm:$0xff]
      %v547 = vld [vmem:[#allocation2 + $0x78] sm:$0xff]
      %v548 = vld [vmem:[#allocation2 + $0x80] sm:$0xff]
      %v549 = vld [vmem:[#allocation2 + $0x88] sm:$0xff]
      %v550 = vld [vmem:[#allocation2 + $0x90] sm:$0xff]
      %v551 = vld [vmem:[#allocation2 + $0x98] sm:$0xff]
      %v552 = vld [vmem:[#allocation2 + $0xa0] sm:$0xff]
      %v553 = vld [vmem:[#allocation2 + $0xa8] sm:$0xff]
      %v554 = vld [vmem:[#allocation2 + $0xb0] sm:$0xff]
      %v555 = vld [vmem:[#allocation2 + $0xb8] sm:$0xff]
      %v556 = vld [vmem:[#allocation2 + $0xc0] sm:$0xff]
      %v557 = vld [vmem:[#allocation2 + $0xc8] sm:$0xff]
      %v558 = vld [vmem:[#allocation2 + $0xd0] sm:$0xff]
      %v559 = vld [vmem:[#allocation2 + $0xd8] sm:$0xff]
      %v560 = vld [vmem:[#allocation2 + $0xe0] sm:$0xff]
      %v561 = vld [vmem:[#allocation2 + $0xe8] sm:$0xff]
      %v562 = vld [vmem:[#allocation2 + $0xf0] sm:$0xff]
      %v563 = vld [vmem:[#allocation2 + $0xf8] sm:$0xff]
      %v564 = vld [vmem:[%s2] sm:$0x1]
      %v566 = vlaneseq
      %v567 = vshrl.u32 %v566, 7
      %v568 = vsub.s32 0, %v567
      %v569 = vrot.slane %v564, %v568
      %v571 = vadd.f32 %v532, %v569
      %v572 = vadd.f32 %v533, %v569
      %v573 = vadd.f32 %v534, %v569
      %v574 = vadd.f32 %v535, %v569
      %v575 = vadd.f32 %v536, %v569
      %v576 = vadd.f32 %v537, %v569
      %v577 = vadd.f32 %v538, %v569
      %v578 = vadd.f32 %v539, %v569
      %v579 = vadd.f32 %v540, %v569
      %v580 = vadd.f32 %v541, %v569
      %v581 = vadd.f32 %v542, %v569
      %v582 = vadd.f32 %v543, %v569
      %v583 = vadd.f32 %v544, %v569
      %v584 = vadd.f32 %v545, %v569
      %v585 = vadd.f32 %v546, %v569
      %v586 = vadd.f32 %v547, %v569
      %v587 = vadd.f32 %v548, %v569
      %v588 = vadd.f32 %v549, %v569
      %v589 = vadd.f32 %v550, %v569
      %v590 = vadd.f32 %v551, %v569
      %v591 = vadd.f32 %v552, %v569
      %v592 = vadd.f32 %v553, %v569
      %v593 = vadd.f32 %v554, %v569
      %v594 = vadd.f32 %v555, %v569
      %v595 = vadd.f32 %v556, %v569
      %v596 = vadd.f32 %v557, %v569
      %v597 = vadd.f32 %v558, %v569
      %v598 = vadd.f32 %v559, %v569
      %v599 = vadd.f32 %v560, %v569
      %v600 = vadd.f32 %v561, %v569
      %v601 = vadd.f32 %v562, %v569
      %v602 = vadd.f32 %v563, %v569
      %v603 = vmax.f32 %v571, 0.0
      %v604 = vmax.f32 %v572, 0.0
      %v605 = vmax.f32 %v573, 0.0
      %v606 = vmax.f32 %v574, 0.0
      %v607 = vmax.f32 %v575, 0.0
      %v608 = vmax.f32 %v576, 0.0
      %v609 = vmax.f32 %v577, 0.0
      %v610 = vmax.f32 %v578, 0.0
      %v611 = vmax.f32 %v579, 0.0
      %v612 = vmax.f32 %v580, 0.0
      %v613 = vmax.f32 %v581, 0.0
      %v614 = vmax.f32 %v582, 0.0
      %v615 = vmax.f32 %v583, 0.0
      %v616 = vmax.f32 %v584, 0.0
      %v617 = vmax.f32 %v585, 0.0
      %v618 = vmax.f32 %v586, 0.0
      %v619 = vmax.f32 %v587, 0.0
      %v620 = vmax.f32 %v588, 0.0
      %v621 = vmax.f32 %v589, 0.0
      %v622 = vmax.f32 %v590, 0.0
      %v623 = vmax.f32 %v591, 0.0
      %v624 = vmax.f32 %v592, 0.0
      %v625 = vmax.f32 %v593, 0.0
      %v626 = vmax.f32 %v594, 0.0
      %v627 = vmax.f32 %v595, 0.0
      %v628 = vmax.f32 %v596, 0.0
      %v629 = vmax.f32 %v597, 0.0
      %v630 = vmax.f32 %v598, 0.0
      %v631 = vmax.f32 %v599, 0.0
      %v632 = vmax.f32 %v600, 0.0
      %v633 = vmax.f32 %v601, 0.0
      %v634 = vmax.f32 %v602, 0.0
      %635 = vst [vmem:[#allocation8] sm:$0xff] %v603
      %636 = vst [vmem:[#allocation8 + $0x8] sm:$0xff] %v604
      %637 = vst [vmem:[#allocation8 + $0x10] sm:$0xff] %v605
      %638 = vst [vmem:[#allocation8 + $0x18] sm:$0xff] %v606
      %639 = vst [vmem:[#allocation8 + $0x20] sm:$0xff] %v607
      %640 = vst [vmem:[#allocation8 + $0x28] sm:$0xff] %v608
      %641 = vst [vmem:[#allocation8 + $0x30] sm:$0xff] %v609
      %642 = vst [vmem:[#allocation8 + $0x38] sm:$0xff] %v610
      %643 = vst [vmem:[#allocation8 + $0x40] sm:$0xff] %v611
      %644 = vst [vmem:[#allocation8 + $0x48] sm:$0xff] %v612
      %645 = vst [vmem:[#allocation8 + $0x50] sm:$0xff] %v613
      %646 = vst [vmem:[#allocation8 + $0x58] sm:$0xff] %v614
      %647 = vst [vmem:[#allocation8 + $0x60] sm:$0xff] %v615
      %648 = vst [vmem:[#allocation8 + $0x68] sm:$0xff] %v616
      %649 = vst [vmem:[#allocation8 + $0x70] sm:$0xff] %v617
      %650 = vst [vmem:[#allocation8 + $0x78] sm:$0xff] %v618
      %651 = vst [vmem:[#allocation8 + $0x80] sm:$0xff] %v619
      %652 = vst [vmem:[#allocation8 + $0x88] sm:$0xff] %v620
      %653 = vst [vmem:[#allocation8 + $0x90] sm:$0xff] %v621
      %654 = vst [vmem:[#allocation8 + $0x98] sm:$0xff] %v622
      %655 = vst [vmem:[#allocation8 + $0xa0] sm:$0xff] %v623
      %656 = vst [vmem:[#allocation8 + $0xa8] sm:$0xff] %v624
      %657 = vst [vmem:[#allocation8 + $0xb0] sm:$0xff] %v625
      %658 = vst [vmem:[#allocation8 + $0xb8] sm:$0xff] %v626
      %659 = vst [vmem:[#allocation8 + $0xc0] sm:$0xff] %v627
      %660 = vst [vmem:[#allocation8 + $0xc8] sm:$0xff] %v628
      %661 = vst [vmem:[#allocation8 + $0xd0] sm:$0xff] %v629
      %662 = vst [vmem:[#allocation8 + $0xd8] sm:$0xff] %v630
      %663 = vst [vmem:[#allocation8 + $0xe0] sm:$0xff] %v631
      %664 = vst [vmem:[#allocation8 + $0xe8] sm:$0xff] %v632
      %665 = vst [vmem:[#allocation8 + $0xf0] sm:$0xff] %v633
      %666 = vst [vmem:[#allocation8 + $0xf8] sm:$0xff] %v634
    $region29: #{tpu_custom_call.1} parent=1 // pred_fallthru
      _
    // Predicated region
    $region30: #{tpu_custom_call.1} parent=1 // pred_check
      _
    $region31: #{tpu_custom_call.1} parent=1 // pred_check_branch
      %668 = sbr.rel (0) target = $region33
    $region32: #{tpu_custom_call.1} parent=1 // pred_region
      %s670 = ssub.s32 4096, 4096
      %671 = vsyncadd [#allocation5], %s670
      %s672 = sshll.u32 [#allocation8], 4
      %s673 = int_to_ptr.vmem [resolvable:$true] %s672
      %678 = dma.vmem_to_hbm [thread:$0]  %s673, 4096, %s3, [#allocation5], 128, 128, 8
    $region33: #{tpu_custom_call.1} parent=1 // pred_fallthru
      _
    // Predicated region
    $region34: #{tpu_custom_call.1} parent=1 // pred_check
      _
    $region35: #{tpu_custom_call.1} parent=1 // pred_check_branch
      %680 = sbr.rel (0) target = $region37
    $region36: #{tpu_custom_call.1} parent=1 // pred_region
      %681 = dma.done [#allocation5], 4096
    $region37: #{tpu_custom_call.1} parent=1 // pred_fallthru
      _
    %682 = vsyncpa [#allocation4], 1
    %683 = vsyncpa [#allocation7], 1
    %684 = vsyncpa [#allocation5], 1

</llo_original>
